<compile_context>
chip_gen: v7x
topology: tpu7x:2x2x1
jax: 0.10.0
libtpu: 0.0.40
codegen_flags: <defaults>
</compile_context>

<pallas_src>
import jax
import jax.numpy as jnp
from jax import lax
from jax.experimental import pallas as pl
from jax.experimental.pallas import tpu as pltpu


# --------------------------------------------------------------------------
# Border masks: 0/1 (1, H*W) vectors per (oh, ow) tap (None if no mask needed).
# Computed once per kernel invocation, applied with a multiply.
# --------------------------------------------------------------------------
def _build_border_masks(H, W, ks, dtype):
    M = H * W
    pad = ks // 2
    mi = lax.broadcasted_iota(jnp.int32, (1, M), 1)
    if (W & (W - 1)) == 0:
        col = jnp.bitwise_and(mi, W - 1)
    else:
        col = mi % W
    masks = {}
    for oh in range(-pad, pad + 1):
        for ow in range(-pad, pad + 1):
            valid = None
            if ow != 0:                                   # horizontal border
                valid = (col >= -ow) & (col <= W - 1 - ow)
            if oh > 0:                                    # bottom border
                v = mi < (H - oh) * W
                valid = v if valid is None else (valid & v)
            elif oh < 0:                                  # top border
                v = mi >= (-oh) * W
                valid = v if valid is None else (valid & v)
            masks[(oh, ow)] = None if valid is None else valid.astype(dtype)
    return masks


# --------------------------------------------------------------------------
# Conv(+ previous layer's BN affine + ReLU as prologue) + BN partial stats.
# One grid step == one image (flattened NCHW: activations are (Cin, H*W)).
# --------------------------------------------------------------------------
def _make_conv_bn_stats_kernel(H, W, ks, cin, cout, *, has_prologue, fold,
                               compute_dtype):
    M = H * W
    pad = ks // 2

    def kernel(*refs):
        if has_prologue:
            x_ref, scale_ref, shift_ref, w_ref, y_ref, stats_ref = refs
        else:
            x_ref, w_ref, y_ref, stats_ref = refs

        masks = _build_border_masks(H, W, ks, jnp.float32)

        a = x_ref[0].astype(jnp.float32)                          # (cin, M)
        if has_prologue:
            # Previous layer's BatchNorm affine + ReLU, fused into this conv's
            # prologue so the intermediate makes a single HBM round trip.
            a = jnp.maximum(a * scale_ref[...] + shift_ref[...], 0.0)

        def tap(oh, ow):
            delta = oh * W + ow
            t = a if delta == 0 else pltpu.roll(a, (-delta) % M, 1)
            m = masks[(oh, ow)]
            if m is not None:
                t = t * m                                         # zero halo
            return t.astype(compute_dtype)

        if fold:
            # Small Cin: fold all ks*ks taps into ONE K = ks*ks*cin MXU matmul.
            patch = jnp.concatenate(
                [tap(oh, ow) for oh in range(-pad, pad + 1)
                 for ow in range(-pad, pad + 1)], axis=0)         # (K, M)
            y = jnp.dot(w_ref[...], patch,
                        preferred_element_type=jnp.float32)       # (cout, M)
        else:
            # Larger Cin: do NOT materialize the 9x im2col; accumulate one
            # K = ks*cin matmul per kernel row into an f32 accumulator.
            y = jnp.zeros((cout, M), jnp.float32)
            for r, oh in enumerate(range(-pad, pad + 1)):
                patch = jnp.concatenate(
                    [tap(oh, ow) for ow in range(-pad, pad + 1)], axis=0)
                y = y + jnp.dot(w_ref[r], patch,
                                preferred_element_type=jnp.float32)

        # Raw conv output (bias dropped: training-mode BN cancels it exactly).
        y_ref[0] = y

        # Per-tile BatchNorm partial statistics (per output channel).
        s = y.sum(axis=1, keepdims=True)                          # (cout, 1)
        ss = (y * y).sum(axis=1, keepdims=True)                   # (cout, 1)
        stats_ref[0] = jnp.concatenate([s, ss], axis=1)           # (cout, 2)

    return kernel


# --------------------------------------------------------------------------
# Final BatchNorm affine + ReLU (elementwise, fully parallel over the grid).
# --------------------------------------------------------------------------
def _affine_relu_kernel(y_ref, scale_ref, shift_ref, o_ref):
    o_ref[0] = jnp.maximum(y_ref[0] * scale_ref[...] + shift_ref[...], 0.0)


# --------------------------------------------------------------------------
# Wrapper: NCHW in, NCHW out. Only free metadata reshapes at the boundary.
# --------------------------------------------------------------------------
def unet_conv2_forward(x_nchw, params, *, compute_dtype=jnp.float32,
                       fold_k_max=64, eps=1e-5):
    N, c0, H, W = x_nchw.shape
    M = H * W
    vmem_limit = 48 * 1024 * 1024          # safe on v5e/v6e (128 MiB) & v7x (64 MiB)

    a = x_nchw.reshape(N, c0, M)           # free reshape of NCHW
    scale = shift = None
    cout = c0

    for layer, (w_hwio, _bias, gamma, beta) in enumerate(params):
        kh, kw, cin, cout = w_hwio.shape
        K = kh * kw * cin
        fold = K <= fold_k_max             # small threshold -> both paths run in the demo
        has_prologue = layer > 0

        # (kh,kw,ci,co) -> (co, (kh*kw)*ci): taps folded into the matmul K dim.
        w_mat = jnp.transpose(w_hwio.reshape(kh * kw, cin, cout), (2, 0, 1))
        w_mat = w_mat.reshape(cout, K).astype(compute_dtype)
        if fold:
            w_spec = pl.BlockSpec((cout, K), lambda n: (0, 0))
        else:
            # One (cout, kw*cin) slab per kernel row for the accumulate path.
            w_mat = w_mat.reshape(cout, kh, kw * cin).transpose(1, 0, 2)
            w_spec = pl.BlockSpec((kh, cout, kw * cin), lambda n: (0, 0, 0))

        inputs = [a]
        in_specs = [pl.BlockSpec((1, cin, M), lambda n: (n, 0, 0))]
        if has_prologue:
            inputs += [scale, shift]
            in_specs += [pl.BlockSpec((cin, 1), lambda n: (0, 0)),
                         pl.BlockSpec((cin, 1), lambda n: (0, 0))]
        inputs.append(w_mat)
        in_specs.append(w_spec)

        kernel = _make_conv_bn_stats_kernel(
            H, W, kh, cin, cout, has_prologue=has_prologue, fold=fold,
            compute_dtype=compute_dtype)

        flops = 2 * N * M * cout * K + 8 * N * cout * M
        bytes_accessed = (int(a.size) * a.dtype.itemsize
                          + int(w_mat.size) * w_mat.dtype.itemsize
                          + N * cout * (M + 2) * 4)

        y, stats = pl.pallas_call(
            kernel,
            out_shape=(jax.ShapeDtypeStruct((N, cout, M), jnp.float32),
                       jax.ShapeDtypeStruct((N, cout, 2), jnp.float32)),
            grid=(N,),
            in_specs=in_specs,
            out_specs=(pl.BlockSpec((1, cout, M), lambda n: (n, 0, 0)),
                       pl.BlockSpec((1, cout, 2), lambda n: (n, 0, 0))),
            compiler_params=pltpu.CompilerParams(
                dimension_semantics=("parallel",),
                vmem_limit_bytes=vmem_limit),
            cost_estimate=pl.CostEstimate(flops=flops, transcendentals=0,
                                          bytes_accessed=bytes_accessed),
        )(*inputs)

        # Combine per-tile partial stats: tiny O(Cout) math, plain XLA.
        tot = stats.sum(axis=0)                                   # (cout, 2)
        count = float(N * M)
        mean = tot[:, 0] / count
        var = tot[:, 1] / count - mean * mean                     # biased var
        inv = lax.rsqrt(var + eps)
        g_inv = gamma * inv
        scale = g_inv.reshape(cout, 1).astype(jnp.float32)
        shift = (beta - mean * g_inv).reshape(cout, 1).astype(jnp.float32)
        a = y

    out = pl.pallas_call(
        _affine_relu_kernel,
        out_shape=jax.ShapeDtypeStruct((N, cout, M), jnp.float32),
        grid=(N,),
        in_specs=[pl.BlockSpec((1, cout, M), lambda n: (n, 0, 0)),
                  pl.BlockSpec((cout, 1), lambda n: (0, 0)),
                  pl.BlockSpec((cout, 1), lambda n: (0, 0))],
        out_specs=pl.BlockSpec((1, cout, M), lambda n: (n, 0, 0)),
        compiler_params=pltpu.CompilerParams(
            dimension_semantics=("parallel",),
            vmem_limit_bytes=vmem_limit),
        cost_estimate=pl.CostEstimate(
            flops=3 * N * cout * M, transcendentals=0,
            bytes_accessed=2 * N * cout * M * 4 + 2 * cout * 4),
    )(a, scale, shift)
    return out.reshape(N, cout, H, W)                             # free reshape


# --------------------------------------------------------------------------
# Parameter init mirroring init_weights(..., 'kaiming') on unetConv2.
# --------------------------------------------------------------------------
def init_unet_conv2_params(key, in_size, out_size, n=2, ks=3):
    params = []
    c_in = in_size
    for _ in range(n):
        key, kw_, kb, kg = jax.random.split(key, 4)
        fan_in = c_in * ks * ks
        std = (2.0 / fan_in) ** 0.5                      # kaiming_normal_, fan_in
        w = std * jax.random.normal(kw_, (ks, ks, c_in, out_size), jnp.float32)
        bound = 1.0 / fan_in ** 0.5                      # PyTorch conv bias default
        b = jax.random.uniform(kb, (out_size,), jnp.float32, -bound, bound)
        gamma = 1.0 + 0.02 * jax.random.normal(kg, (out_size,), jnp.float32)
        beta = jnp.zeros((out_size,), jnp.float32)
        params.append((w, b, gamma, beta))
        c_in = out_size
    return params


# Pure-JAX reference of the same forward (correctness check only).
def reference_forward(x_nchw, params, compute_dtype=jnp.float32):
    x = x_nchw
    for (w_hwio, b, gamma, beta) in params:
        w_oihw = jnp.transpose(w_hwio, (3, 2, 0, 1))
        y = lax.conv_general_dilated(
            x.astype(compute_dtype), w_oihw.astype(compute_dtype),
            window_strides=(1, 1), padding=((1, 1), (1, 1)),
            dimension_numbers=('NCHW', 'OIHW', 'NCHW'),
            preferred_element_type=jnp.float32)
        y = y + b[None, :, None, None]
        mean = jnp.mean(y, axis=(0, 2, 3), keepdims=True)
        var = jnp.mean((y - mean) ** 2, axis=(0, 2, 3), keepdims=True)
        y = (y - mean) * lax.rsqrt(var + 1e-5)
        y = y * gamma[None, :, None, None] + beta[None, :, None, None]
        x = jnp.maximum(y, 0.0)
    return x


if __name__ == "__main__":
    N, Cin, H, W = 2, 4, 16, 16
    Cout = 8

    key = jax.random.PRNGKey(0)
    kx, kp = jax.random.split(key)
    x = jax.random.normal(kx, (N, Cin, H, W), jnp.float32)
    params = init_unet_conv2_params(kp, Cin, Cout, n=2, ks=3)

    # f32 MXU path: must match the f32 PyTorch-equivalent reference tightly.
    out = jax.block_until_ready(unet_conv2_forward(x, params))
    ref = reference_forward(x, params)
    assert out.shape == (N, Cout, H, W), out.shape
    assert jnp.allclose(out, ref, atol=1e-4, rtol=1e-4), \
        float(jnp.max(jnp.abs(out - ref)))

    # bf16 MXU path (v6e/v7x production setting): compared against a reference
    # that also feeds bf16 operands to the conv with f32 accumulation.
    out_bf = jax.block_until_ready(
        unet_conv2_forward(x, params, compute_dtype=jnp.bfloat16))
    ref_bf = reference_forward(x, params, compute_dtype=jnp.bfloat16)
    assert out_bf.shape == (N, Cout, H, W), out_bf.shape
    assert jnp.allclose(out_bf, ref_bf, atol=5e-2, rtol=5e-2), \
        float(jnp.max(jnp.abs(out_bf - ref_bf)))

    print("KERNEL_OK")
</pallas_src>

<mosaic_0001>
module attributes {stable_mosaic.version = 11 : i64} {
  func.func @kernel(%arg0: i32, %arg1: memref<1x4x256xf32, #tpu.memory_space<vmem>>, %arg2: memref<8x36xf32, #tpu.memory_space<vmem>>, %arg3: memref<1x8x256xf32, #tpu.memory_space<vmem>>, %arg4: memref<1x8x2xf32, #tpu.memory_space<vmem>>) attributes {dimension_semantics = [#tpu.dimension_semantics<parallel>], iteration_bounds = array<i64: 2>, scalar_prefetch = 0 : i64, scratch_operands = 0 : i64, tpu.core_type = #tpu.core_type<tc>, window_params = [{transform_indices = @transform_0, window_bounds = array<i64: 1, 4, 256>}, {pipeline_mode = #tpu.pipeline_mode<synchronous>, transform_indices = @transform_1, window_bounds = array<i64: 8, 36>}, {transform_indices = @transform_2, window_bounds = array<i64: 1, 8, 256>}, {transform_indices = @transform_3, window_bounds = array<i64: 1, 8, 2>}]} {
    %0 = tpu.iota {dimensions = array<i32: 1>} : vector<1x256xi32>
    %c15_i32 = arith.constant 15 : i32
    %1 = vector.broadcast %c15_i32 : i32 to vector<1x256xi32>
    %2 = arith.andi %0, %1 : vector<1x256xi32>
    %c1_i32 = arith.constant 1 : i32
    %3 = vector.broadcast %c1_i32 : i32 to vector<1x256xi32>
    %4 = arith.cmpi sge, %2, %3 : vector<1x256xi32>
    %c16_i32 = arith.constant 16 : i32
    %5 = vector.broadcast %c16_i32 : i32 to vector<1x256xi32>
    %6 = arith.cmpi sle, %2, %5 : vector<1x256xi32>
    %7 = arith.andi %4, %6 : vector<1x256xi1>
    %c16_i32_0 = arith.constant 16 : i32
    %8 = vector.broadcast %c16_i32_0 : i32 to vector<1x256xi32>
    %9 = arith.cmpi sge, %0, %8 : vector<1x256xi32>
    %10 = arith.andi %7, %9 : vector<1x256xi1>
    %11 = arith.extui %10 : vector<1x256xi1> to vector<1x256xi32>
    %12 = arith.sitofp %11 : vector<1x256xi32> to vector<1x256xf32>
    %c16_i32_1 = arith.constant 16 : i32
    %13 = vector.broadcast %c16_i32_1 : i32 to vector<1x256xi32>
    %14 = arith.cmpi sge, %0, %13 : vector<1x256xi32>
    %15 = arith.extui %14 : vector<1x256xi1> to vector<1x256xi32>
    %16 = arith.sitofp %15 : vector<1x256xi32> to vector<1x256xf32>
    %c-1_i32 = arith.constant -1 : i32
    %17 = vector.broadcast %c-1_i32 : i32 to vector<1x256xi32>
    %18 = arith.cmpi sge, %2, %17 : vector<1x256xi32>
    %c14_i32 = arith.constant 14 : i32
    %19 = vector.broadcast %c14_i32 : i32 to vector<1x256xi32>
    %20 = arith.cmpi sle, %2, %19 : vector<1x256xi32>
    %21 = arith.andi %18, %20 : vector<1x256xi1>
    %c16_i32_2 = arith.constant 16 : i32
    %22 = vector.broadcast %c16_i32_2 : i32 to vector<1x256xi32>
    %23 = arith.cmpi sge, %0, %22 : vector<1x256xi32>
    %24 = arith.andi %21, %23 : vector<1x256xi1>
    %25 = arith.extui %24 : vector<1x256xi1> to vector<1x256xi32>
    %26 = arith.sitofp %25 : vector<1x256xi32> to vector<1x256xf32>
    %c1_i32_3 = arith.constant 1 : i32
    %27 = vector.broadcast %c1_i32_3 : i32 to vector<1x256xi32>
    %28 = arith.cmpi sge, %2, %27 : vector<1x256xi32>
    %c16_i32_4 = arith.constant 16 : i32
    %29 = vector.broadcast %c16_i32_4 : i32 to vector<1x256xi32>
    %30 = arith.cmpi sle, %2, %29 : vector<1x256xi32>
    %31 = arith.andi %28, %30 : vector<1x256xi1>
    %32 = arith.extui %31 : vector<1x256xi1> to vector<1x256xi32>
    %33 = arith.sitofp %32 : vector<1x256xi32> to vector<1x256xf32>
    %c-1_i32_5 = arith.constant -1 : i32
    %34 = vector.broadcast %c-1_i32_5 : i32 to vector<1x256xi32>
    %35 = arith.cmpi sge, %2, %34 : vector<1x256xi32>
    %c14_i32_6 = arith.constant 14 : i32
    %36 = vector.broadcast %c14_i32_6 : i32 to vector<1x256xi32>
    %37 = arith.cmpi sle, %2, %36 : vector<1x256xi32>
    %38 = arith.andi %35, %37 : vector<1x256xi1>
    %39 = arith.extui %38 : vector<1x256xi1> to vector<1x256xi32>
    %40 = arith.sitofp %39 : vector<1x256xi32> to vector<1x256xf32>
    %c1_i32_7 = arith.constant 1 : i32
    %41 = vector.broadcast %c1_i32_7 : i32 to vector<1x256xi32>
    %42 = arith.cmpi sge, %2, %41 : vector<1x256xi32>
    %c16_i32_8 = arith.constant 16 : i32
    %43 = vector.broadcast %c16_i32_8 : i32 to vector<1x256xi32>
    %44 = arith.cmpi sle, %2, %43 : vector<1x256xi32>
    %45 = arith.andi %42, %44 : vector<1x256xi1>
    %c240_i32 = arith.constant 240 : i32
    %46 = vector.broadcast %c240_i32 : i32 to vector<1x256xi32>
    %47 = arith.cmpi slt, %0, %46 : vector<1x256xi32>
    %48 = arith.andi %45, %47 : vector<1x256xi1>
    %49 = arith.extui %48 : vector<1x256xi1> to vector<1x256xi32>
    %50 = arith.sitofp %49 : vector<1x256xi32> to vector<1x256xf32>
    %c240_i32_9 = arith.constant 240 : i32
    %51 = vector.broadcast %c240_i32_9 : i32 to vector<1x256xi32>
    %52 = arith.cmpi slt, %0, %51 : vector<1x256xi32>
    %53 = arith.extui %52 : vector<1x256xi1> to vector<1x256xi32>
    %54 = arith.sitofp %53 : vector<1x256xi32> to vector<1x256xf32>
    %c-1_i32_10 = arith.constant -1 : i32
    %55 = vector.broadcast %c-1_i32_10 : i32 to vector<1x256xi32>
    %56 = arith.cmpi sge, %2, %55 : vector<1x256xi32>
    %c14_i32_11 = arith.constant 14 : i32
    %57 = vector.broadcast %c14_i32_11 : i32 to vector<1x256xi32>
    %58 = arith.cmpi sle, %2, %57 : vector<1x256xi32>
    %59 = arith.andi %56, %58 : vector<1x256xi1>
    %c240_i32_12 = arith.constant 240 : i32
    %60 = vector.broadcast %c240_i32_12 : i32 to vector<1x256xi32>
    %61 = arith.cmpi slt, %0, %60 : vector<1x256xi32>
    %62 = arith.andi %59, %61 : vector<1x256xi1>
    %63 = arith.extui %62 : vector<1x256xi1> to vector<1x256xi32>
    %64 = arith.sitofp %63 : vector<1x256xi32> to vector<1x256xf32>
    %c0 = arith.constant 0 : index
    %c0_13 = arith.constant 0 : index
    %c0_14 = arith.constant 0 : index
    %65 = vector.load %arg1[%c0, %c0_13, %c0_14] : memref<1x4x256xf32, #tpu.memory_space<vmem>>, vector<1x4x256xf32>
    %66 = vector.shape_cast %65 : vector<1x4x256xf32> to vector<4x256xf32>
    %c17_i32 = arith.constant 17 : i32
    %67 = tpu.dynamic_rotate %66 by %c17_i32 dim 1 : vector<4x256xf32>, i32 -> vector<4x256xf32>
    %68 = vector.broadcast %12 : vector<1x256xf32> to vector<4x256xf32>
    %69 = arith.mulf %67, %68 : vector<4x256xf32>
    %c16_i32_15 = arith.constant 16 : i32
    %70 = tpu.dynamic_rotate %66 by %c16_i32_15 dim 1 : vector<4x256xf32>, i32 -> vector<4x256xf32>
    %71 = vector.broadcast %16 : vector<1x256xf32> to vector<4x256xf32>
    %72 = arith.mulf %70, %71 : vector<4x256xf32>
    %c15_i32_16 = arith.constant 15 : i32
    %73 = tpu.dynamic_rotate %66 by %c15_i32_16 dim 1 : vector<4x256xf32>, i32 -> vector<4x256xf32>
    %74 = vector.broadcast %26 : vector<1x256xf32> to vector<4x256xf32>
    %75 = arith.mulf %73, %74 : vector<4x256xf32>
    %c1_i32_17 = arith.constant 1 : i32
    %76 = tpu.dynamic_rotate %66 by %c1_i32_17 dim 1 : vector<4x256xf32>, i32 -> vector<4x256xf32>
    %77 = vector.broadcast %33 : vector<1x256xf32> to vector<4x256xf32>
    %78 = arith.mulf %76, %77 : vector<4x256xf32>
    %c255_i32 = arith.constant 255 : i32
    %79 = tpu.dynamic_rotate %66 by %c255_i32 dim 1 : vector<4x256xf32>, i32 -> vector<4x256xf32>
    %80 = vector.broadcast %40 : vector<1x256xf32> to vector<4x256xf32>
    %81 = arith.mulf %79, %80 : vector<4x256xf32>
    %c241_i32 = arith.constant 241 : i32
    %82 = tpu.dynamic_rotate %66 by %c241_i32 dim 1 : vector<4x256xf32>, i32 -> vector<4x256xf32>
    %83 = vector.broadcast %50 : vector<1x256xf32> to vector<4x256xf32>
    %84 = arith.mulf %82, %83 : vector<4x256xf32>
    %c240_i32_18 = arith.constant 240 : i32
    %85 = tpu.dynamic_rotate %66 by %c240_i32_18 dim 1 : vector<4x256xf32>, i32 -> vector<4x256xf32>
    %86 = vector.broadcast %54 : vector<1x256xf32> to vector<4x256xf32>
    %87 = arith.mulf %85, %86 : vector<4x256xf32>
    %c239_i32 = arith.constant 239 : i32
    %88 = tpu.dynamic_rotate %66 by %c239_i32 dim 1 : vector<4x256xf32>, i32 -> vector<4x256xf32>
    %89 = vector.broadcast %64 : vector<1x256xf32> to vector<4x256xf32>
    %90 = arith.mulf %88, %89 : vector<4x256xf32>
    %91 = tpu.concatenate %69, %72, %75, %78, %66, %81, %84, %87, %90 in 0 : vector<4x256xf32>, vector<4x256xf32>, vector<4x256xf32>, vector<4x256xf32>, vector<4x256xf32>, vector<4x256xf32>, vector<4x256xf32>, vector<4x256xf32>, vector<4x256xf32> -> vector<36x256xf32>
    %c0_19 = arith.constant 0 : index
    %c0_20 = arith.constant 0 : index
    %92 = vector.load %arg2[%c0_19, %c0_20] : memref<8x36xf32, #tpu.memory_space<vmem>>, vector<8x36xf32>
    %cst = arith.constant dense<0.000000e+00> : vector<8x256xf32>
    %93 = tpu.matmul %92, %91, %cst {dimension_numbers = #tpu.dot_dimension_numbers<[1], [0], [0], [1], [0, 0, 1, 1], [], []>} : vector<8x36xf32>, vector<36x256xf32>, vector<8x256xf32> -> vector<8x256xf32>
    %c0_21 = arith.constant 0 : index
    %c0_22 = arith.constant 0 : index
    %c0_23 = arith.constant 0 : index
    %94 = vector.load %arg3[%c0_21, %c0_22, %c0_23] : memref<1x8x256xf32, #tpu.memory_space<vmem>>, vector<1x8x256xf32>
    %95 = vector.shape_cast %94 : vector<1x8x256xf32> to vector<8x256xf32>
    %96 = vector.shape_cast %93 : vector<8x256xf32> to vector<1x8x256xf32>
    tpu.vector_store %arg3[%c0_21, %c0_22, %c0_23], %96 {strides = array<i32>} : memref<1x8x256xf32, #tpu.memory_space<vmem>>, vector<1x8x256xf32>,
    %cst_24 = arith.constant dense<0.000000e+00> : vector<8xf32>
    %97 = vector.multi_reduction <add>, %93, %cst_24 [1] : vector<8x256xf32> to vector<8xf32>
    %98 = vector.shape_cast %97 : vector<8xf32> to vector<8x1xf32>
    %99 = arith.mulf %93, %93 : vector<8x256xf32>
    %cst_25 = arith.constant dense<0.000000e+00> : vector<8xf32>
    %100 = vector.multi_reduction <add>, %99, %cst_25 [1] : vector<8x256xf32> to vector<8xf32>
    %101 = vector.shape_cast %100 : vector<8xf32> to vector<8x1xf32>
    %102 = tpu.concatenate %98, %101 in 1 : vector<8x1xf32>, vector<8x1xf32> -> vector<8x2xf32>
    %c0_26 = arith.constant 0 : index
    %c0_27 = arith.constant 0 : index
    %c0_28 = arith.constant 0 : index
    %103 = vector.load %arg4[%c0_26, %c0_27, %c0_28] : memref<1x8x2xf32, #tpu.memory_space<vmem>>, vector<1x8x2xf32>
    %104 = vector.shape_cast %103 : vector<1x8x2xf32> to vector<8x2xf32>
    %105 = vector.shape_cast %102 : vector<8x2xf32> to vector<1x8x2xf32>
    tpu.vector_store %arg4[%c0_26, %c0_27, %c0_28], %105 {strides = array<i32>} : memref<1x8x2xf32, #tpu.memory_space<vmem>>, vector<1x8x2xf32>,
    return
  }
  func.func @transform_0(%arg0: i32) -> (i32, i32, i32) {
    %c0_i32 = arith.constant 0 : i32
    %c0_i32_0 = arith.constant 0 : i32
    %c0_i32_1 = arith.constant 0 : i32
    return %arg0, %c0_i32, %c0_i32_0 : i32, i32, i32
  }
  func.func @transform_1(%arg0: i32) -> (i32, i32) {
    %c0_i32 = arith.constant 0 : i32
    %c0_i32_0 = arith.constant 0 : i32
    %c0_i32_1 = arith.constant 0 : i32
    return %c0_i32, %c0_i32_0 : i32, i32
  }
  func.func @transform_2(%arg0: i32) -> (i32, i32, i32) {
    %c0_i32 = arith.constant 0 : i32
    %c0_i32_0 = arith.constant 0 : i32
    %c0_i32_1 = arith.constant 0 : i32
    return %arg0, %c0_i32, %c0_i32_0 : i32, i32, i32
  }
  func.func @transform_3(%arg0: i32) -> (i32, i32, i32) {
    %c0_i32 = arith.constant 0 : i32
    %c0_i32_0 = arith.constant 0 : i32
    %c0_i32_1 = arith.constant 0 : i32
    return %arg0, %c0_i32, %c0_i32_0 : i32, i32, i32
  }
}

</mosaic_0001>

<llo_original>
// kernel: tpu_custom_call.1
$region0: #{tpu_custom_call.1}
  #allocation0 [shape = 'u32[]', space=smem, size = 0x4, offset = 0x4, fixed_abs, tag = 'smem constant byte address 0x4 - core index']
  #allocation1 [shape = 'u32[144,128]{1,0:T(1,128)}', space=vmem, size = 0x12000, scoped, tag = 'internal scratch']
  %s0 = inlined_call_operand.hbm [shape: f32[2,4,256], index: 0, kind: input, shape index: {}]
  %s1 = inlined_call_operand.hbm [shape: f32[8,36], index: 1, kind: input, shape index: {}]
  %s2 = inlined_call_operand.hbm [shape: f32[2,8,256], index: 2, kind: output, shape index: {0}]
  %s3 = inlined_call_operand.vmem [shape: f32[2,8,2], index: 3, kind: output, shape index: {1}]
  %4 = xla_tuple %s2, %s3
  %s5 = sld [smem:[#allocation0]]
  $region57: #{tpu_custom_call.1} parent=0
    _
  %s7 = ssub.s32 1, %s5
  %s8 = scalar_select 0, %s7, %s5
  $region1: #{tpu_custom_call.1} parent=0
    #allocation2 [shape = 'u8[8192]{0}', space=vmem, size = 0x2000, scoped, tag = 'input window, operand 0']
    #allocation3 [shape = 's32[2]{0}', space=sflag, size = 0x8, scoped, tag = 'scoped memory for tpu_custom_call.1']
    #allocation4 [shape = 's32[2]{0}', space=sflag, size = 0x8, scoped, tag = 'scoped memory for tpu_custom_call.1']
    #allocation5 [shape = 'u8[4096]{0}', space=vmem, size = 0x1000, scoped, tag = 'input window, operand 1, single buffered']
    #allocation6 [shape = 's32[1]{0}', space=sflag, size = 0x4, scoped, tag = 'scoped memory for tpu_custom_call.1']
    #allocation7 [shape = 'u8[16384]{0}', space=vmem, size = 0x4000, scoped, tag = 'output window, operand 0']
    %9 = vsyncpa [#allocation3], 0
    %s10 = scalar_lea.sflag [#allocation3], 1
    %11 = vsyncpa %s10, 0
    %12 = vsyncpa [#allocation6], 0
    %13 = vsyncpa [#allocation4], 0
    %s14 = scalar_lea.sflag [#allocation4], 1
    %15 = vsyncpa %s14, 0
    loop: start=0, step=1, limit=4
    $region2: #{tpu_custom_call.1} parent=1 // loop_pre_header
      _
    $region3: #{tpu_custom_call.1} parent=1 // loop_header
      %s17 = sphi 0, %s21
      %p18 = scmp.ge.s32.totalorder %s17, 4
      %s27 = sphi 0, %s29
      %s30 = sphi 0, %s27
      %s31 = sphi 0, %s30
      %s47 = sphi 0, %s31
      %s51 = sphi 0, %s51
      %s53 = sphi 0, %s51
      %s54 = sphi 0, %s53
      %s68 = sphi 0, %s54
      %s74 = sphi 0, %s76
      %s77 = sphi 0, %s74
      %s78 = sphi 0, %s77
      %s94 = sphi 0, %s78
      %s100 = sphi 0, %s102
      %s103 = sphi 0, %s100
      %s104 = sphi 0, %s103
      %s120 = sphi 0, %s104
    $region4: #{tpu_custom_call.1} parent=1 // loop_header_branch
      %20 = sbr.rel (%p18) target = $region8
    $region5: #{tpu_custom_call.1} parent=1 // loop_body
      %s22 = ssub.s32 %s17, 1
      %s23 = ssub.s32 %s17, 2
      %s24 = sadd.s32 %s17, 1
      %s25 = ssub.s32 %s17, %s24
      %p26 = scmp.eq.s32.totalorder %s25, 0
      %s28 = sadd.s32 %s27, 1
      %s29 = scalar_select %p26, %s27, %s28
      %p32 = pneg %p26
      %p33 = scmp.eq.s32.totalorder %s17, 1
      %p34 = por %p32, %p33
      %p35 = scmp.ne.s32.totalorder %s27, %s30
      %p36 = scmp.eq.s32.totalorder %s17, 0
      %p37 = por %p35, %p36
      %p38 = scmp.ne.s32.totalorder %s27, %s30
      %p39 = scmp.eq.s32.totalorder %s22, 1
      %p40 = por %p38, %p39
      %p41 = scmp.ne.s32.totalorder %s30, %s31
      %p42 = scmp.eq.s32.totalorder %s22, 0
      %p43 = por %p41, %p42
      %p44 = scmp.ne.s32.totalorder %s30, %s31
      %p45 = scmp.eq.s32.totalorder %s23, 1
      %p46 = por %p44, %p45
      %p48 = scmp.ne.s32.totalorder %s31, %s47
      %p49 = scmp.eq.s32.totalorder %s23, 0
      %p50 = por %p48, %p49
      %s52 = sadd.s32 %s51, 1
      %p55 = scmp.eq.s32.totalorder %s17, 1
      %p56 = scmp.ne.s32.totalorder %s51, %s53
      %p57 = scmp.eq.s32.totalorder %s17, 0
      %p58 = por %p56, %p57
      %p59 = scmp.ne.s32.totalorder %s51, %s53
      %p60 = scmp.eq.s32.totalorder %s22, 1
      %p61 = por %p59, %p60
      %p62 = scmp.ne.s32.totalorder %s53, %s54
      %p63 = scmp.eq.s32.totalorder %s22, 0
      %p64 = por %p62, %p63
      %p65 = scmp.ne.s32.totalorder %s53, %s54
      %p66 = scmp.eq.s32.totalorder %s23, 1
      %p67 = por %p65, %p66
      %p69 = scmp.ne.s32.totalorder %s54, %s68
      %p70 = scmp.eq.s32.totalorder %s23, 0
      %p71 = por %p69, %p70
      %s72 = ssub.s32 %s17, %s24
      %p73 = scmp.eq.s32.totalorder %s72, 0
      %s75 = sadd.s32 %s74, 1
      %s76 = scalar_select %p73, %s74, %s75
      %p79 = pneg %p73
      %p80 = scmp.eq.s32.totalorder %s17, 1
      %p81 = por %p79, %p80
      %p82 = scmp.ne.s32.totalorder %s74, %s77
      %p83 = scmp.eq.s32.totalorder %s17, 0
      %p84 = por %p82, %p83
      %p85 = scmp.ne.s32.totalorder %s74, %s77
      %p86 = scmp.eq.s32.totalorder %s22, 1
      %p87 = por %p85, %p86
      %p88 = scmp.ne.s32.totalorder %s77, %s78
      %p89 = scmp.eq.s32.totalorder %s22, 0
      %p90 = por %p88, %p89
      %p91 = scmp.ne.s32.totalorder %s77, %s78
      %p92 = scmp.eq.s32.totalorder %s23, 1
      %p93 = por %p91, %p92
      %p95 = scmp.ne.s32.totalorder %s78, %s94
      %p96 = scmp.eq.s32.totalorder %s23, 0
      %p97 = por %p95, %p96
      %s98 = ssub.s32 %s17, %s24
      %p99 = scmp.eq.s32.totalorder %s98, 0
      %s101 = sadd.s32 %s100, 1
      %s102 = scalar_select %p99, %s100, %s101
      %p105 = pneg %p99
      %p106 = scmp.eq.s32.totalorder %s17, 1
      %p107 = por %p105, %p106
      %p108 = scmp.ne.s32.totalorder %s100, %s103
      %p109 = scmp.eq.s32.totalorder %s17, 0
      %p110 = por %p108, %p109
      %p111 = scmp.ne.s32.totalorder %s100, %s103
      %p112 = scmp.eq.s32.totalorder %s22, 1
      %p113 = por %p111, %p112
      %p114 = scmp.ne.s32.totalorder %s103, %s104
      %p115 = scmp.eq.s32.totalorder %s22, 0
      %p116 = por %p114, %p115
      %p117 = scmp.ne.s32.totalorder %s103, %s104
      %p118 = scmp.eq.s32.totalorder %s23, 1
      %p119 = por %p117, %p118
      %p121 = scmp.ne.s32.totalorder %s104, %s120
      %p122 = scmp.eq.s32.totalorder %s23, 0
      %p123 = por %p121, %p122
      %p124 = scmp.le.s32.totalorder 1, %s17
      %p125 = scmp.lt.s32.totalorder %s17, 3
      %p126 = pnand %p124, %p125
      %p127 = pneg %p126
      // Predicated region
      $region9: #{tpu_custom_call.1} parent=5 // pred_check
        _
      $region10: #{tpu_custom_call.1} parent=5 // pred_check_branch
        %129 = sbr.rel (%p126) target = $region12
      $region11: #{tpu_custom_call.1} parent=5 // pred_region
        %s130 = ssub.s32 %s17, 1
        // Predicated region
        $region13: #{tpu_custom_call.1} parent=11 // pred_check
          %p131 = pneg %p64
        $region14: #{tpu_custom_call.1} parent=11 // pred_check_branch
          %133 = sbr.rel (%p131) target = $region16
        $region15: #{tpu_custom_call.1} parent=11 // pred_region
          %s135 = ssub.s32 128, 128
          %136 = vsyncadd [#allocation6], %s135
          %s138 = sshll.u32 [#allocation5], 4
          %s139 = int_to_ptr.vmem [resolvable:$true] %s138
          %141 = dma.hbm_to_vmem [thread:$0]  %s1, 128, %s139, [#allocation6]
        $region16: #{tpu_custom_call.1} parent=11 // pred_fallthru
          _
      $region12: #{tpu_custom_call.1} parent=5 // pred_fallthru
        _
      %p142 = scmp.lt.s32.totalorder %s17, 2
      // Predicated region
      $region17: #{tpu_custom_call.1} parent=5 // pred_check
        %p143 = pneg %p142
      $region18: #{tpu_custom_call.1} parent=5 // pred_check_branch
        %145 = sbr.rel (%p143) target = $region20
      $region19: #{tpu_custom_call.1} parent=5 // pred_region
        // Predicated region
        $region21: #{tpu_custom_call.1} parent=19 // pred_check
          %p146 = pneg %p37
        $region22: #{tpu_custom_call.1} parent=19 // pred_check_branch
          %148 = sbr.rel (%p146) target = $region24
        $region23: #{tpu_custom_call.1} parent=19 // pred_region
          %s149 = sand.u32 %s27, 1
          %s150 = scalar_lea.sflag [#allocation3], %s149
          %s151 = sand.u32 %s27, 1
          %s152 = smul.addr %s151, 8
          %s153 = scalar_lea.vmem [#allocation2], %s152
          %s155 = ssub.s32 128, 128
          %156 = vsyncadd %s150, %s155
          %s157 = smul.addr %s17, 2
          %s158 = smul.addr %s157, 64
          %s159 = scalar_lea.hbm %s0, %s158
          %s161 = sshll.u32 %s153, 4
          %s162 = int_to_ptr.vmem [resolvable:$true] %s161
          %164 = dma.hbm_to_vmem [thread:$0]  %s159, 128, %s162, %s150
        $region24: #{tpu_custom_call.1} parent=19 // pred_fallthru
          _
      $region20: #{tpu_custom_call.1} parent=5 // pred_fallthru
        _
      %p165 = scmp.le.s32.totalorder 1, %s17
      %p166 = scmp.lt.s32.totalorder %s17, 3
      %p167 = pnand %p165, %p166
      %p168 = pneg %p167
      // Predicated region
      $region25: #{tpu_custom_call.1} parent=5 // pred_check
        _
      $region26: #{tpu_custom_call.1} parent=5 // pred_check_branch
        %170 = sbr.rel (%p167) target = $region28
      $region27: #{tpu_custom_call.1} parent=5 // pred_region
        %s171 = ssub.s32 %s17, 1
        %s172 = sand.u32 %s30, 1
        %s173 = scalar_lea.sflag [#allocation3], %s172
        %s174 = sand.u32 %s30, 1
        %s175 = smul.addr %s174, 8
        %s176 = scalar_lea.vmem [#allocation2], %s175
        // Predicated region
        $region29: #{tpu_custom_call.1} parent=27 // pred_check
          %p177 = pneg %p43
        $region30: #{tpu_custom_call.1} parent=27 // pred_check_branch
          %179 = sbr.rel (%p177) target = $region32
        $region31: #{tpu_custom_call.1} parent=27 // pred_region
          %180 = dma.done %s173, 128
        $region32: #{tpu_custom_call.1} parent=27 // pred_fallthru
          _
        // Predicated region
        $region33: #{tpu_custom_call.1} parent=27 // pred_check
          %p181 = pneg %p64
        $region34: #{tpu_custom_call.1} parent=27 // pred_check_branch
          %183 = sbr.rel (%p181) target = $region36
        $region35: #{tpu_custom_call.1} parent=27 // pred_region
          %184 = dma.done [#allocation6], 128
        $region36: #{tpu_custom_call.1} parent=27 // pred_fallthru
          _
        %s185 = sand.u32 %s30, 1
        %s186 = scalar_lea.sflag [#allocation3], %s185
        %s187 = sand.u32 %s30, 1
        %s188 = smul.addr %s187, 8
        %s189 = scalar_lea.vmem [#allocation2], %s188
        %p190 = pneg %p43
        %p191 = pneg %p40
        %p192 = pneg %p64
        %p193 = pneg %p61
        %p194 = pneg %p90
        %p195 = pneg %p87
        %s196 = sand.u32 %s77, 1
        %s197 = scalar_lea.sflag [#allocation4], %s196
        %s198 = sand.u32 %s77, 1
        %s199 = smul.addr %s198, 16
        %s200 = scalar_lea.vmem [#allocation7], %s199
        %p201 = pneg %p116
        %p202 = pneg %p113
        %p203 = scmp.lt.s32.totalorder %s22, 1
        %s204 = scalar_select %p203, %s22, 1
        %s205 = smul.addr %s204, 8
        %s206 = scalar_lea.vmem %s3, %s205
        %p207 = scmp.lt.s32.totalorder %s22, 1
        %s208 = scalar_select %p207, %s22, 1
        %s209 = smul.addr %s208, 8
        %s210 = scalar_lea.vmem %s3, %s209
        %v211 = vlaneseq
        %v212 = vand.u32 %v211, 127
        %v213 = vadd.s32 %v212, 128
        %v214 = vand.u32 %v212, 15
        %v215 = vand.u32 %v213, 15
        %vm216 = vcmp.ge.s32.totalorder %v214, 1
        %vm217 = vcmp.ge.s32.totalorder %v215, 1
        %vm218 = vcmp.le.s32.totalorder %v214, 16
        %vm219 = vcmp.le.s32.totalorder %v215, 16
        %vm220 = vmand %vm216, %vm218
        %vm221 = vmand %vm217, %vm219
        %vm222 = vcmp.ge.s32.totalorder %v212, 16
        %vm223 = vcmp.ge.s32.totalorder %v213, 16
        %vm224 = vmand %vm220, %vm222
        %vm225 = vmand %vm221, %vm223
        %v226 = vsel %vm224, 1, 0
        %v227 = vsel %vm225, 1, 0
        %v228 = vcvt.s32.f32 %v226
        %v229 = vcvt.s32.f32 %v227
        %v230 = vsel %vm222, 1, 0
        %v231 = vsel %vm223, 1, 0
        %v232 = vcvt.s32.f32 %v230
        %v233 = vcvt.s32.f32 %v231
        %vm234 = vcmp.ge.s32.totalorder %v214, 4294967295
        %vm235 = vcmp.ge.s32.totalorder %v215, 4294967295
        %vm236 = vcmp.le.s32.totalorder %v214, 14
        %vm237 = vcmp.le.s32.totalorder %v215, 14
        %vm238 = vmand %vm234, %vm236
        %vm239 = vmand %vm235, %vm237
        %vm240 = vmand %vm238, %vm222
        %vm241 = vmand %vm239, %vm223
        %v242 = vsel %vm240, 1, 0
        %v243 = vsel %vm241, 1, 0
        %v244 = vcvt.s32.f32 %v242
        %v245 = vcvt.s32.f32 %v243
        %v246 = vsel %vm220, 1, 0
        %v247 = vsel %vm221, 1, 0
        %v248 = vcvt.s32.f32 %v246
        %v249 = vcvt.s32.f32 %v247
        %v250 = vsel %vm238, 1, 0
        %v251 = vsel %vm239, 1, 0
        %v252 = vcvt.s32.f32 %v250
        %v253 = vcvt.s32.f32 %v251
        %vm254 = vcmp.lt.s32.totalorder %v212, 240
        %vm255 = vcmp.lt.s32.totalorder %v213, 240
        %vm256 = vmand %vm220, %vm254
        %vm257 = vmand %vm221, %vm255
        %v258 = vsel %vm256, 1, 0
        %v259 = vsel %vm257, 1, 0
        %v260 = vcvt.s32.f32 %v258
        %v261 = vcvt.s32.f32 %v259
        %v262 = vsel %vm254, 1, 0
        %v263 = vsel %vm255, 1, 0
        %v264 = vcvt.s32.f32 %v262
        %v265 = vcvt.s32.f32 %v263
        %vm266 = vmand %vm238, %vm254
        %vm267 = vmand %vm239, %vm255
        %v268 = vsel %vm266, 1, 0
        %v269 = vsel %vm267, 1, 0
        %v270 = vcvt.s32.f32 %v268
        %v271 = vcvt.s32.f32 %v269
        %v272 = vld [vmem:[%s176] sm:$0xff]
        %v274 = vcombine.high %v272, %v272
        %276 = vrot.lane.b32.xlu0 %v272, 17
        %v277 = vpop.permute.xlu0 %276
        %278 = vrot.lane.b32.xlu0 %v274, 17
        %v279 = vpop.permute.xlu0 %278
        %vm280 = vcmp.lt.s32.totalorder %v212, 17
        %v281 = vsel %vm280, %v277, %v279
        %v282 = vsel %vm280, %v279, %v277
        %v283 = vmul.f32 %v282, %v228
        %v284 = vmul.f32 %v281, %v229
        %285 = vrot.lane.b32.xlu0 %v272, 16
        %v286 = vpop.permute.xlu0 %285
        %287 = vrot.lane.b32.xlu0 %v274, 16
        %v288 = vpop.permute.xlu0 %287
        %vm289 = vcmp.lt.s32.totalorder %v212, 16
        %v290 = vsel %vm289, %v286, %v288
        %v291 = vsel %vm289, %v288, %v286
        %v292 = vmul.f32 %v291, %v232
        %v293 = vmul.f32 %v290, %v233
        %294 = vrot.lane.b32.xlu0 %v272, 15
        %v295 = vpop.permute.xlu0 %294
        %296 = vrot.lane.b32.xlu0 %v274, 15
        %v297 = vpop.permute.xlu0 %296
        %vm298 = vcmp.lt.s32.totalorder %v212, 15
        %v299 = vsel %vm298, %v295, %v297
        %v300 = vsel %vm298, %v297, %v295
        %v301 = vmul.f32 %v300, %v244
        %v302 = vmul.f32 %v299, %v245
        %303 = vrot.lane.b32.xlu0 %v272, 1
        %v304 = vpop.permute.xlu0 %303
        %305 = vrot.lane.b32.xlu0 %v274, 1
        %v306 = vpop.permute.xlu0 %305
        %vm307 = vcmp.lt.s32.totalorder %v212, 1
        %v308 = vsel %vm307, %v304, %v306
        %v309 = vsel %vm307, %v306, %v304
        %v310 = vmul.f32 %v309, %v248
        %v311 = vmul.f32 %v308, %v249
        %312 = vrot.lane.b32.xlu0 %v272, 127
        %v313 = vpop.permute.xlu0 %312
        %314 = vrot.lane.b32.xlu0 %v274, 127
        %v315 = vpop.permute.xlu0 %314
        %vm316 = vcmp.lt.s32.totalorder %v212, 127
        %v317 = vsel %vm316, %v313, %v315
        %v318 = vsel %vm316, %v315, %v313
        %v319 = vmul.f32 %v317, %v252
        %v320 = vmul.f32 %v318, %v253
        %321 = vrot.lane.b32.xlu0 %v272, 113
        %v322 = vpop.permute.xlu0 %321
        %323 = vrot.lane.b32.xlu0 %v274, 113
        %v324 = vpop.permute.xlu0 %323
        %vm325 = vcmp.lt.s32.totalorder %v212, 113
        %v326 = vsel %vm325, %v322, %v324
        %v327 = vsel %vm325, %v324, %v322
        %v328 = vmul.f32 %v326, %v260
        %v329 = vmul.f32 %v327, %v261
        %330 = vrot.lane.b32.xlu0 %v272, 112
        %v331 = vpop.permute.xlu0 %330
        %332 = vrot.lane.b32.xlu0 %v274, 112
        %v333 = vpop.permute.xlu0 %332
        %vm334 = vcmp.lt.s32.totalorder %v212, 112
        %v335 = vsel %vm334, %v331, %v333
        %v336 = vsel %vm334, %v333, %v331
        %v337 = vmul.f32 %v335, %v264
        %v338 = vmul.f32 %v336, %v265
        %339 = vrot.lane.b32.xlu0 %v272, 111
        %v340 = vpop.permute.xlu0 %339
        %341 = vrot.lane.b32.xlu0 %v274, 111
        %v342 = vpop.permute.xlu0 %341
        %vm343 = vcmp.lt.s32.totalorder %v212, 111
        %v344 = vsel %vm343, %v340, %v342
        %v345 = vsel %vm343, %v342, %v340
        %v346 = vmul.f32 %v344, %v270
        %v347 = vmul.f32 %v345, %v271
        %v350 = vrot.slane %v292, 4
        %v351 = vrot.slane %v293, 4
        %v356 = vrot.slane %v310, 4
        %v357 = vrot.slane %v311, 4
        %v362 = vrot.slane %v319, 4
        %v363 = vrot.slane %v320, 4
        %v368 = vrot.slane %v337, 4
        %v369 = vrot.slane %v338, 4
        %vm372 = vcmask 1043456
        %v373 = vsel %vm372, %v283, %v350
        %v374 = vsel %vm372, %v284, %v351
        %v375 = vsel %vm372, %v301, %v356
        %v376 = vsel %vm372, %v302, %v357
        %v377 = vsel %vm372, %v272, %v362
        %v378 = vsel %vm372, %v274, %v363
        %v379 = vsel %vm372, %v328, %v368
        %v380 = vsel %vm372, %v329, %v369
        %v381 = vld [vmem:[#allocation5] sm:$0xff]
        %vm382 = vcmask 293888
        %v384 = vsel %vm382, %v381, 0
        %v387 = vsel %vm372, %v346, 0
        %v390 = vsel %vm372, %v347, 0
        %392 = vmatprep.subr.mxu0 %v374
        %393 = vmatpush1.msra.mxu0 %v373
        %394 = vmatprep.subr.mxu0 %v376
        %395 = vmatpush1.msra.mxu0 %v375
        %396 = vmatprep.subr.mxu0 %v378
        %397 = vmatpush1.msra.mxu0 %v377
        %398 = vmatprep.subr.mxu0 %v380
        %399 = vmatpush1.msra.mxu0 %v379
        %400 = vmatprep.subr.mxu0 %v390
        %401 = vmatpush1.msra.mxu0 %v387
        %402 = vmatprep.subr.mxu0 0.0
        %403 = vmatpush1.msra.mxu0 0.0
        %404 = vmatprep.subr.mxu0 0.0
        %405 = vmatpush1.msra.mxu0 0.0
        %406 = vmatprep.subr.mxu0 0.0
        %407 = vmatpush1.msra.mxu0 0.0
        %408 = vmatprep.subr.mxu0 0.0
        %409 = vmatpush1.msra.mxu0 0.0
        %410 = vmatprep.subr.mxu0 0.0
        %411 = vmatpush1.msra.mxu0 0.0
        %412 = vmatprep.subr.mxu0 0.0
        %413 = vmatpush1.msra.mxu0 0.0
        %414 = vmatprep.subr.mxu0 0.0
        %415 = vmatpush1.msra.mxu0 0.0
        %416 = vmatprep.subr.mxu0 0.0
        %417 = vmatpush1.msra.mxu0 0.0
        %418 = vmatprep.subr.mxu0 0.0
        %419 = vmatpush1.msra.mxu0 0.0
        %420 = vmatprep.subr.mxu0 0.0
        %421 = vmatpush1.msra.mxu0 0.0
        %422 = vmatprep.subr.mxu0 0.0
        %423 = vmatpush1.msra.mxu0 0.0
        %424 = vmatprep.subr.mxu0 0.0
        %425 = vmatpush1.msra.mxu0 0.0
        %426 = vmatprep.subr.mxu0 0.0
        %427 = vmatpush1.msra.mxu0 0.0
        %428 = vmatprep.subr.mxu0 0.0
        %429 = vmatpush1.msra.mxu0 0.0
        %430 = vmatprep.subr.mxu0 0.0
        %431 = vmatpush1.msra.mxu0 0.0
        %432 = vmatprep.subr.mxu0 0.0
        %433 = vmatpush1.msra.mxu0 0.0
        %434 = vmatprep.subr.mxu0 0.0
        %435 = vmatpush1.msra.mxu0 0.0
        %436 = vmatprep.subr.mxu0 0.0
        %437 = vmatpush1.msra.mxu0 0.0
        %438 = vmatprep.subr.mxu0 0.0
        %439 = vmatpush1.msra.mxu0 0.0
        %440 = vmatprep.subr.mxu0 0.0
        %441 = vmatpush1.msra.mxu0 0.0
        %442 = vmatprep.subr.mxu0 0.0
        %443 = vmatpush1.msra.mxu0 0.0
        %444 = vmatprep.subr.mxu0 0.0
        %445 = vmatpush1.msra.mxu0 0.0
        %446 = vmatprep.subr.mxu0 0.0
        %447 = vmatpush1.msra.mxu0 0.0
        %448 = vmatprep.subr.mxu0 0.0
        %449 = vmatpush1.msra.mxu0 0.0
        %450 = vmatprep.subr.mxu0 0.0
        %451 = vmatpush1.msra.mxu0 0.0
        %452 = vmatprep.subr.mxu0 0.0
        %453 = vmatpush1.msra.mxu0 0.0
        %454 = vmatprep.subr.mxu0 0.0
        %455 = vmatpush1.msra.mxu0 0.0
        %456 = vmatprep.mubr.f32.mxu0 0.0
        %457 = vmatmul.mubr.f32.gmra.mrb[0].mxu0 %v384
        %v458 = vpop.f32.mrb[0].mxu0
        %v459 = vadd.f32 0.0, %v458
        %v460 = vpop.f32.mrb[0].mxu0
        %v461 = vadd.f32 0.0, %v460
        %462 = vdwg.mxu0
        %463 = vst [vmem:[%s200] sm:$0xff] %v459
        %464 = vst [vmem:[%s200 + $0x8] sm:$0xff] %v461
        %v465 = vadd.f32 %v459, %v461
        %466 = vadd.xlane.f32.xlu0 %v465
        %v467 = vpop.xlane.xlu0 %466
        %v468 = vmul.f32 %v459, %v459
        %v469 = vmul.f32 %v461, %v461
        %v470 = vadd.f32 %v468, %v469
        %471 = vadd.xlane.f32.xlu0 %v470
        %v472 = vpop.xlane.xlu0 %471
        %vm473 = vcmask 7168
        %v474 = vsel %vm473, %v467, %v472
        %vm475 = vcmask 15360
        %476 = vst.msk [vmem:[%s210] sm:$0xff] %vm475, %v474
        %s477 = sand.u32 %s77, 1
        %s478 = scalar_lea.sflag [#allocation4], %s477
        %s479 = sand.u32 %s77, 1
        %s480 = smul.addr %s479, 16
        %s481 = scalar_lea.vmem [#allocation7], %s480
        %p482 = scmp.lt.s32.totalorder %s22, 1
        %s483 = scalar_select %p482, %s22, 1
        %s484 = smul.addr %s483, 8
        %s485 = scalar_lea.vmem %s3, %s484
        // Predicated region
        $region37: #{tpu_custom_call.1} parent=27 // pred_check
          %p486 = pneg %p87
        $region38: #{tpu_custom_call.1} parent=27 // pred_check_branch
          %488 = sbr.rel (%p486) target = $region40
        $region39: #{tpu_custom_call.1} parent=27 // pred_region
          %s490 = ssub.s32 256, 256
          %491 = vsyncadd %s478, %s490
          %s492 = smul.addr %s22, 2
          %s493 = smul.addr %s492, 128
          %s494 = scalar_lea.hbm %s2, %s493
          %s496 = sshll.u32 %s481, 4
          %s497 = int_to_ptr.vmem [resolvable:$true] %s496
          %499 = dma.vmem_to_hbm [thread:$0]  %s497, 256, %s494, %s478
        $region40: #{tpu_custom_call.1} parent=27 // pred_fallthru
          _
        // Predicated region
        $region41: #{tpu_custom_call.1} parent=27 // pred_check
          %p500 = pneg %p113
        $region42: #{tpu_custom_call.1} parent=27 // pred_check_branch
          %502 = sbr.rel (%p500) target = $region44
        $region43: #{tpu_custom_call.1} parent=27 // pred_region
          _
        $region44: #{tpu_custom_call.1} parent=27 // pred_fallthru
          _
      $region28: #{tpu_custom_call.1} parent=5 // pred_fallthru
        _
      %p503 = scmp.le.s32.totalorder 2, %s17
      // Predicated region
      $region45: #{tpu_custom_call.1} parent=5 // pred_check
        %p504 = pneg %p503
      $region46: #{tpu_custom_call.1} parent=5 // pred_check_branch
        %506 = sbr.rel (%p504) target = $region48
      $region47: #{tpu_custom_call.1} parent=5 // pred_region
        %s507 = ssub.s32 %s17, 2
        // Predicated region
        $region49: #{tpu_custom_call.1} parent=47 // pred_check
          %p508 = pneg %p93
        $region50: #{tpu_custom_call.1} parent=47 // pred_check_branch
          %510 = sbr.rel (%p508) target = $region52
        $region51: #{tpu_custom_call.1} parent=47 // pred_region
          %s511 = sand.u32 %s78, 1
          %s512 = scalar_lea.sflag [#allocation4], %s511
          %s513 = sand.u32 %s78, 1
          %s514 = smul.addr %s513, 16
          %s515 = scalar_lea.vmem [#allocation7], %s514
          %516 = dma.done %s512, 256
        $region52: #{tpu_custom_call.1} parent=47 // pred_fallthru
          _
        // Predicated region
        $region53: #{tpu_custom_call.1} parent=47 // pred_check
          %p517 = pneg %p119
        $region54: #{tpu_custom_call.1} parent=47 // pred_check_branch
          %519 = sbr.rel (%p517) target = $region56
        $region55: #{tpu_custom_call.1} parent=47 // pred_region
          %p520 = scmp.lt.s32.totalorder %s23, 1
          %s521 = scalar_select %p520, %s23, 1
          %s522 = smul.addr %s521, 8
          %s523 = scalar_lea.vmem %s3, %s522
        $region56: #{tpu_custom_call.1} parent=47 // pred_fallthru
          _
      $region48: #{tpu_custom_call.1} parent=5 // pred_fallthru
        _
    $region6: #{tpu_custom_call.1} parent=1 // loop_footer
      %s21 = sadd.s32 1, %s17
    $region7: #{tpu_custom_call.1} parent=1 // loop_footer_branch
      %16 = sbr.rel target = $region3
    $region8: #{tpu_custom_call.1} parent=1 // loop_exit
      _
    %524 = vsyncpa [#allocation3], 1
    %s525 = scalar_lea.sflag [#allocation3], 1
    %526 = vsyncpa %s525, 1
    %527 = vsyncpa [#allocation6], 1
    %528 = vsyncpa [#allocation4], 1
    %s529 = scalar_lea.sflag [#allocation4], 1
    %530 = vsyncpa %s529, 1

</llo_original>
